<compile_context>
chip_gen: v7x
topology: tpu7x:2x2x1
jax: 0.10.0
libtpu: 0.0.40
codegen_flags: <defaults>
</compile_context>

<pallas_src>
import jax
import jax.numpy as jnp
from jax.experimental import pallas as pl
from jax.experimental.pallas import tpu as pltpu

N_FEATS = 8
N_WINDOW = 5
H = 16                        # n_hidden (only used for host-side folding)
N = N_FEATS * N_WINDOW        # 40
LANE = 128                    # lane width / padded output feature dim

# packed-parameter slab layout (rows x 128 lanes, bf16)
B_ROW = 128                   # bias row
SLAB_ROWS = 144               # multiple of 16 (bf16 sublane tile)

_BT_MAX = 1024                # largest batch tile (VMEM live ~3 MiB at 1024 -> fits everywhere)
_BT_MIN = 16                  # bf16 sublane granularity


def _round_up(a, m):
    return -(-a // m) * m


def _pick_tile(batch):
    """Pick (batch_tile, padded_batch).  Large tiles amortize per-grid-step overhead;
    ~half the batch (capped at _BT_MAX) keeps the grid >= 2 steps so the 'parallel'
    dimension can be sharded across both TensorCores on v7x."""
    b16 = _round_up(max(batch, 1), _BT_MIN)
    half = _round_up(-(-b16 // 2), _BT_MIN)
    bt = max(_BT_MIN, min(_BT_MAX, half))
    bpad = _round_up(b16, bt)
    return bt, bpad


def _sigmoid(x):
    # exp -> EUP, approximate reciprocal -> EUP: keeps the sigmoid off the VALU slots.
    return pl.reciprocal(1.0 + jnp.exp(-x), approx=True)


def _madgan_kernel(x_ref, w_ref, out_ref):
    x = x_ref[...]                                        # (bt, 40) bf16
    w_in = w_ref[0:N, :]                                  # (40, 128) bf16  — stage-1 weight
    w_full = w_ref[0:LANE, :]                             # (128, 128) bf16 — stage-2 (rows >= 40 are 0)
    b = w_ref[B_ROW:B_ROW + 1, :].astype(jnp.float32)     # (1, 128)

    # Stage 1: generator AND discriminator(real) in one matmul.
    #   lanes [0,40) -> z pre-sigmoid, lanes 40,41 -> real-score pre-sigmoid.
    h1 = jnp.dot(x, w_in, preferred_element_type=jnp.float32) + b        # (bt, 128) f32
    s1 = _sigmoid(h1)                                                     # z / real_score

    # Stage 2: discriminator(fake) reuses the same weight; because W_d is duplicated in
    # lane 41 and weight rows >= 40 are zero, lane 41 of h2 = z @ W_d + b_d exactly.
    h2 = jnp.dot(s1.astype(jnp.bfloat16), w_full,
                 preferred_element_type=jnp.float32) + b                  # (bt, 128) f32
    s2 = _sigmoid(h2)                                                     # fake_score in lane 41

    # Single select: lanes [0,40]=stage-1 (z + real), lanes >= 41 = stage-2 (fake in lane 41).
    lane = jax.lax.broadcasted_iota(jnp.int32, h1.shape, 1)
    out_ref[...] = jnp.where(lane <= N, s1, s2)


def pack_params(p):
    """Fold each 3-layer MLP into a single affine map (exact: LeakyReLU(True) is the
    identity) and pack everything into one (144, 128) bf16 slab -> a single, VMEM-resident
    weight DMA per pallas_call."""
    wg = p['gw1'] @ p['gw2'] @ p['gw3']                            # (N, N)
    bg = (p['gb1'] @ p['gw2'] + p['gb2']) @ p['gw3'] + p['gb3']    # (N,)
    wd = p['dw1'] @ p['dw2'] @ p['dw3']                            # (N, 1)
    bd = (p['db1'] @ p['dw2'] + p['db2']) @ p['dw3'] + p['db3']    # (1,)

    slab = jnp.zeros((SLAB_ROWS, LANE), jnp.float32)
    slab = slab.at[0:N, 0:N].set(wg)
    slab = slab.at[0:N, N].set(wd[:, 0])
    slab = slab.at[0:N, N + 1].set(wd[:, 0])     # duplicate W_d -> fake score lands in lane 41
    slab = slab.at[B_ROW, 0:N].set(bg)
    slab = slab.at[B_ROW, N].set(bd[0])
    slab = slab.at[B_ROW, N + 1].set(bd[0])
    return slab.astype(jnp.bfloat16)


def mad_gan_forward_batched(gbatch, packed):
    """gbatch: (B, n_window, feats). Returns (z (B,N), real (B,), fake (B,))."""
    B = gbatch.shape[0]
    x = gbatch.reshape(B, N).astype(jnp.bfloat16)         # lane dim stays at 40 (no host pad)
    bt, bpad = _pick_tile(B)
    xp = jnp.pad(x, ((0, bpad - B), (0, 0)))

    out = pl.pallas_call(
        _madgan_kernel,
        out_shape=jax.ShapeDtypeStruct((bpad, LANE), jnp.float32),
        grid=(bpad // bt,),
        in_specs=[pl.BlockSpec((bt, N), lambda i: (i, 0)),                 # last dim == full dim
                  pl.BlockSpec((SLAB_ROWS, LANE), lambda i: (0, 0))],      # weights VMEM-resident
        out_specs=pl.BlockSpec((bt, LANE), lambda i: (i, 0)),              # lane-dense f32 store
        compiler_params=pltpu.CompilerParams(dimension_semantics=("parallel",)),
    )(xp, packed)

    out = out[:B]
    return out[:, :N], out[:, N], out[:, N + 1]


def mad_gan_forward(g, packed):
    """Exact semantics of MAD_GAN.forward(g): g (n_window, feats) ->
    (z (N,), real_score (1,), fake_score (1,))."""
    z, real, fake = mad_gan_forward_batched(g[None], packed)
    return z[0], real[0:1], fake[0:1]


def reference_forward(gbatch, p):
    """Pure-JAX f32 reference matching the PyTorch module as written
    (nn.LeakyReLU(True) -> negative_slope=1.0 -> identity)."""
    x = gbatch.reshape(gbatch.shape[0], N).astype(jnp.float32)
    h = x @ p['gw1'] + p['gb1']
    h = h @ p['gw2'] + p['gb2']
    z = jax.nn.sigmoid(h @ p['gw3'] + p['gb3'])

    def disc(a):
        d = a @ p['dw1'] + p['db1']
        d = d @ p['dw2'] + p['db2']
        return jax.nn.sigmoid(d @ p['dw3'] + p['db3'])

    return z, disc(x)[:, 0], disc(z)[:, 0]


if __name__ == "__main__":
    key = jax.random.PRNGKey(0)
    keys = jax.random.split(key, 14)

    def w(k, shape, scale=0.1):
        return jax.random.normal(k, shape, jnp.float32) * scale

    params = {
        # generator: Linear(N,16) -> Linear(16,16) -> Linear(16,N); weights are (in, out)
        'gw1': w(keys[0], (N, H)),  'gb1': w(keys[1], (H,), 0.01),
        'gw2': w(keys[2], (H, H)),  'gb2': w(keys[3], (H,), 0.01),
        'gw3': w(keys[4], (H, N)),  'gb3': w(keys[5], (N,), 0.01),
        # discriminator: Linear(N,16) -> Linear(16,16) -> Linear(16,1)
        'dw1': w(keys[6], (N, H)),  'db1': w(keys[7], (H,), 0.01),
        'dw2': w(keys[8], (H, H)),  'db2': w(keys[9], (H,), 0.01),
        'dw3': w(keys[10], (H, 1)), 'db3': w(keys[11], (1,), 0.01),
    }
    packed = pack_params(params)

    # ---- batched path: 256 windows per pallas_call (2 x 128-row parallel grid steps) ----
    B = 256
    gbatch = jax.random.normal(keys[12], (B, N_WINDOW, N_FEATS), jnp.float32)
    z_b, real_b, fake_b = jax.block_until_ready(mad_gan_forward_batched(gbatch, packed))

    assert z_b.shape == (B, N) and real_b.shape == (B,) and fake_b.shape == (B,)
    z_r, real_r, fake_r = reference_forward(gbatch, params)
    assert float(jnp.max(jnp.abs(z_b - z_r))) < 1e-2
    assert float(jnp.max(jnp.abs(real_b - real_r))) < 1e-2
    assert float(jnp.max(jnp.abs(fake_b - fake_r))) < 1e-2

    # ---- single-window path: exact MAD_GAN.forward(g) semantics ----
    g = jax.random.normal(keys[13], (N_WINDOW, N_FEATS), jnp.float32)
    z, real_score, fake_score = jax.block_until_ready(mad_gan_forward(g, packed))
    assert z.shape == (N,)
    assert real_score.shape == (1,)
    assert fake_score.shape == (1,)
    z1r, real1r, fake1r = reference_forward(g[None], params)
    assert float(jnp.max(jnp.abs(z - z1r[0]))) < 1e-2
    assert float(jnp.max(jnp.abs(real_score - real1r))) < 1e-2
    assert float(jnp.max(jnp.abs(fake_score - fake1r))) < 1e-2

    print("KERNEL_OK")
</pallas_src>

<mosaic_0001>
module attributes {stable_mosaic.version = 11 : i64} {
  func.func @_madgan_kernel(%arg0: i32, %arg1: memref<128x40xbf16, #tpu.memory_space<vmem>>, %arg2: memref<144x128xbf16, #tpu.memory_space<vmem>>, %arg3: memref<128x128xf32, #tpu.memory_space<vmem>>) attributes {dimension_semantics = [#tpu.dimension_semantics<parallel>], iteration_bounds = array<i64: 2>, scalar_prefetch = 0 : i64, scratch_operands = 0 : i64, tpu.core_type = #tpu.core_type<tc>, window_params = [{transform_indices = @transform_0, window_bounds = array<i64: 128, 40>}, {pipeline_mode = #tpu.pipeline_mode<synchronous>, transform_indices = @transform_1, window_bounds = array<i64: 144, 128>}, {transform_indices = @transform_2, window_bounds = array<i64: 128, 128>}]} {
    %c0 = arith.constant 0 : index
    %c0_0 = arith.constant 0 : index
    %0 = vector.load %arg1[%c0, %c0_0] : memref<128x40xbf16, #tpu.memory_space<vmem>>, vector<128x40xbf16>
    %c0_1 = arith.constant 0 : index
    %c0_2 = arith.constant 0 : index
    %1 = vector.load %arg2[%c0_1, %c0_2] : memref<144x128xbf16, #tpu.memory_space<vmem>>, vector<40x128xbf16>
    %c0_3 = arith.constant 0 : index
    %c0_4 = arith.constant 0 : index
    %2 = vector.load %arg2[%c0_3, %c0_4] : memref<144x128xbf16, #tpu.memory_space<vmem>>, vector<128x128xbf16>
    %c128 = arith.constant 128 : index
    %c0_5 = arith.constant 0 : index
    %3 = vector.load %arg2[%c128, %c0_5] : memref<144x128xbf16, #tpu.memory_space<vmem>>, vector<1x128xbf16>
    %4 = arith.extf %3 : vector<1x128xbf16> to vector<1x128xf32>
    %cst = arith.constant dense<0.000000e+00> : vector<128x128xf32>
    %5 = tpu.matmul %0, %1, %cst {dimension_numbers = #tpu.dot_dimension_numbers<[1], [0], [0], [1], [0, 0, 1, 1], [], []>} : vector<128x40xbf16>, vector<40x128xbf16>, vector<128x128xf32> -> vector<128x128xf32>
    %6 = vector.broadcast %4 : vector<1x128xf32> to vector<128x128xf32>
    %7 = arith.addf %5, %6 : vector<128x128xf32>
    %cst_6 = arith.constant 0.000000e+00 : f32
    %8 = vector.broadcast %cst_6 : f32 to vector<128x128xf32>
    %9 = arith.subf %8, %7 : vector<128x128xf32>
    %10 = math.exp %9 : vector<128x128xf32>
    %cst_7 = arith.constant 1.000000e+00 : f32
    %11 = vector.broadcast %cst_7 : f32 to vector<128x128xf32>
    %12 = arith.addf %11, %10 : vector<128x128xf32>
    %13 = tpu.reciprocal %12 {approx = true} : vector<128x128xf32> -> vector<128x128xf32>
    %14 = arith.truncf %13 : vector<128x128xf32> to vector<128x128xbf16>
    %cst_8 = arith.constant dense<0.000000e+00> : vector<128x128xf32>
    %15 = tpu.matmul %14, %2, %cst_8 {dimension_numbers = #tpu.dot_dimension_numbers<[1], [0], [0], [1], [0, 0, 1, 1], [], []>} : vector<128x128xbf16>, vector<128x128xbf16>, vector<128x128xf32> -> vector<128x128xf32>
    %16 = vector.broadcast %4 : vector<1x128xf32> to vector<128x128xf32>
    %17 = arith.addf %15, %16 : vector<128x128xf32>
    %cst_9 = arith.constant 0.000000e+00 : f32
    %18 = vector.broadcast %cst_9 : f32 to vector<128x128xf32>
    %19 = arith.subf %18, %17 : vector<128x128xf32>
    %20 = math.exp %19 : vector<128x128xf32>
    %cst_10 = arith.constant 1.000000e+00 : f32
    %21 = vector.broadcast %cst_10 : f32 to vector<128x128xf32>
    %22 = arith.addf %21, %20 : vector<128x128xf32>
    %23 = tpu.reciprocal %22 {approx = true} : vector<128x128xf32> -> vector<128x128xf32>
    %24 = tpu.iota {dimensions = array<i32: 1>} : vector<128x128xi32>
    %c40_i32 = arith.constant 40 : i32
    %25 = vector.broadcast %c40_i32 : i32 to vector<128x128xi32>
    %26 = arith.cmpi sle, %24, %25 : vector<128x128xi32>
    %27 = arith.select %26, %13, %23 : vector<128x128xi1>, vector<128x128xf32>
    %c0_11 = arith.constant 0 : index
    %c0_12 = arith.constant 0 : index
    %28 = vector.load %arg3[%c0_11, %c0_12] : memref<128x128xf32, #tpu.memory_space<vmem>>, vector<128x128xf32>
    tpu.vector_store %arg3[%c0_11, %c0_12], %27 {strides = array<i32>} : memref<128x128xf32, #tpu.memory_space<vmem>>, vector<128x128xf32>,
    return
  }
  func.func @transform_0(%arg0: i32) -> (i32, i32) {
    %c0_i32 = arith.constant 0 : i32
    %c0_i32_0 = arith.constant 0 : i32
    return %arg0, %c0_i32 : i32, i32
  }
  func.func @transform_1(%arg0: i32) -> (i32, i32) {
    %c0_i32 = arith.constant 0 : i32
    %c0_i32_0 = arith.constant 0 : i32
    %c0_i32_1 = arith.constant 0 : i32
    return %c0_i32, %c0_i32_0 : i32, i32
  }
  func.func @transform_2(%arg0: i32) -> (i32, i32) {
    %c0_i32 = arith.constant 0 : i32
    %c0_i32_0 = arith.constant 0 : i32
    return %arg0, %c0_i32 : i32, i32
  }
}

</mosaic_0001>

<llo_original>
// kernel: tpu_custom_call.1
$region0: #{tpu_custom_call.1}
  #allocation0 [shape = 'u32[]', space=smem, size = 0x4, offset = 0x4, fixed_abs, tag = 'smem constant byte address 0x4 - core index']
  #allocation1 [shape = 'u32[144,128]{1,0:T(1,128)}', space=vmem, size = 0x12000, scoped, tag = 'internal scratch']
  %s0 = inlined_call_operand.vmem [shape: bf16[256,40], index: 0, kind: input, shape index: {}]
  %s1 = inlined_call_operand.vmem [shape: bf16[144,128], index: 1, kind: input, shape index: {}]
  %s2 = inlined_call_operand.hbm [shape: f32[256,128], index: 2, kind: output, shape index: {}]
  %s3 = sld [smem:[#allocation0]]
  $region41: #{tpu_custom_call.1} parent=0
    _
  %s5 = ssub.s32 1, %s3
  %s6 = scalar_select 0, %s5, %s3
  $region1: #{tpu_custom_call.1} parent=0
    #allocation2 [shape = 'u8[131072]{0}', space=vmem, size = 0x20000, scoped, tag = 'output window, operand 0']
    #allocation3 [shape = 's32[2]{0}', space=sflag, size = 0x8, scoped, tag = 'scoped memory for tpu_custom_call.1']
    %7 = vsyncpa [#allocation3], 0
    %s8 = scalar_lea.sflag [#allocation3], 1
    %9 = vsyncpa %s8, 0
    loop: start=0, step=1, limit=4
    $region2: #{tpu_custom_call.1} parent=1 // loop_pre_header
      _
    $region3: #{tpu_custom_call.1} parent=1 // loop_header
      %s11 = sphi 0, %s15
      %p12 = scmp.ge.s32.totalorder %s11, 4
      %s21 = sphi 0, %s23
      %s24 = sphi 0, %s21
      %s25 = sphi 0, %s24
      %s41 = sphi 0, %s25
      %s45 = sphi 0, %s45
      %s47 = sphi 0, %s45
      %s48 = sphi 0, %s47
      %s62 = sphi 0, %s48
      %s68 = sphi 0, %s70
      %s71 = sphi 0, %s68
      %s72 = sphi 0, %s71
      %s88 = sphi 0, %s72
    $region4: #{tpu_custom_call.1} parent=1 // loop_header_branch
      %14 = sbr.rel (%p12) target = $region8
    $region5: #{tpu_custom_call.1} parent=1 // loop_body
      %s16 = ssub.s32 %s11, 1
      %s17 = ssub.s32 %s11, 2
      %s18 = sadd.s32 %s11, 1
      %s19 = ssub.s32 %s11, %s18
      %p20 = scmp.eq.s32.totalorder %s19, 0
      %s22 = sadd.s32 %s21, 1
      %s23 = scalar_select %p20, %s21, %s22
      %p26 = pneg %p20
      %p27 = scmp.eq.s32.totalorder %s11, 1
      %p28 = por %p26, %p27
      %p29 = scmp.ne.s32.totalorder %s21, %s24
      %p30 = scmp.eq.s32.totalorder %s11, 0
      %p31 = por %p29, %p30
      %p32 = scmp.ne.s32.totalorder %s21, %s24
      %p33 = scmp.eq.s32.totalorder %s16, 1
      %p34 = por %p32, %p33
      %p35 = scmp.ne.s32.totalorder %s24, %s25
      %p36 = scmp.eq.s32.totalorder %s16, 0
      %p37 = por %p35, %p36
      %p38 = scmp.ne.s32.totalorder %s24, %s25
      %p39 = scmp.eq.s32.totalorder %s17, 1
      %p40 = por %p38, %p39
      %p42 = scmp.ne.s32.totalorder %s25, %s41
      %p43 = scmp.eq.s32.totalorder %s17, 0
      %p44 = por %p42, %p43
      %s46 = sadd.s32 %s45, 1
      %p49 = scmp.eq.s32.totalorder %s11, 1
      %p50 = scmp.ne.s32.totalorder %s45, %s47
      %p51 = scmp.eq.s32.totalorder %s11, 0
      %p52 = por %p50, %p51
      %p53 = scmp.ne.s32.totalorder %s45, %s47
      %p54 = scmp.eq.s32.totalorder %s16, 1
      %p55 = por %p53, %p54
      %p56 = scmp.ne.s32.totalorder %s47, %s48
      %p57 = scmp.eq.s32.totalorder %s16, 0
      %p58 = por %p56, %p57
      %p59 = scmp.ne.s32.totalorder %s47, %s48
      %p60 = scmp.eq.s32.totalorder %s17, 1
      %p61 = por %p59, %p60
      %p63 = scmp.ne.s32.totalorder %s48, %s62
      %p64 = scmp.eq.s32.totalorder %s17, 0
      %p65 = por %p63, %p64
      %s66 = ssub.s32 %s11, %s18
      %p67 = scmp.eq.s32.totalorder %s66, 0
      %s69 = sadd.s32 %s68, 1
      %s70 = scalar_select %p67, %s68, %s69
      %p73 = pneg %p67
      %p74 = scmp.eq.s32.totalorder %s11, 1
      %p75 = por %p73, %p74
      %p76 = scmp.ne.s32.totalorder %s68, %s71
      %p77 = scmp.eq.s32.totalorder %s11, 0
      %p78 = por %p76, %p77
      %p79 = scmp.ne.s32.totalorder %s68, %s71
      %p80 = scmp.eq.s32.totalorder %s16, 1
      %p81 = por %p79, %p80
      %p82 = scmp.ne.s32.totalorder %s71, %s72
      %p83 = scmp.eq.s32.totalorder %s16, 0
      %p84 = por %p82, %p83
      %p85 = scmp.ne.s32.totalorder %s71, %s72
      %p86 = scmp.eq.s32.totalorder %s17, 1
      %p87 = por %p85, %p86
      %p89 = scmp.ne.s32.totalorder %s72, %s88
      %p90 = scmp.eq.s32.totalorder %s17, 0
      %p91 = por %p89, %p90
      %p92 = scmp.le.s32.totalorder 1, %s11
      %p93 = scmp.lt.s32.totalorder %s11, 3
      %p94 = pnand %p92, %p93
      %p95 = pneg %p94
      // Predicated region
      $region9: #{tpu_custom_call.1} parent=5 // pred_check
        _
      $region10: #{tpu_custom_call.1} parent=5 // pred_check_branch
        %97 = sbr.rel (%p94) target = $region12
      $region11: #{tpu_custom_call.1} parent=5 // pred_region
        %s98 = ssub.s32 %s11, 1
        // Predicated region
        $region13: #{tpu_custom_call.1} parent=11 // pred_check
          %p99 = pneg %p58
        $region14: #{tpu_custom_call.1} parent=11 // pred_check_branch
          %101 = sbr.rel (%p99) target = $region16
        $region15: #{tpu_custom_call.1} parent=11 // pred_region
          _
        $region16: #{tpu_custom_call.1} parent=11 // pred_fallthru
          _
      $region12: #{tpu_custom_call.1} parent=5 // pred_fallthru
        _
      %p102 = scmp.lt.s32.totalorder %s11, 2
      // Predicated region
      $region17: #{tpu_custom_call.1} parent=5 // pred_check
        %p103 = pneg %p102
      $region18: #{tpu_custom_call.1} parent=5 // pred_check_branch
        %105 = sbr.rel (%p103) target = $region20
      $region19: #{tpu_custom_call.1} parent=5 // pred_region
        // Predicated region
        $region21: #{tpu_custom_call.1} parent=19 // pred_check
          %p106 = pneg %p31
        $region22: #{tpu_custom_call.1} parent=19 // pred_check_branch
          %108 = sbr.rel (%p106) target = $region24
        $region23: #{tpu_custom_call.1} parent=19 // pred_region
          %s109 = smul.u32 16, %s11
          %p110 = scmp.lt.s32.totalorder %s109, 31
          %s111 = scalar_select %p110, %s109, 31
          %s112 = smul.addr %s111, 4
          %s113 = scalar_lea.vmem %s0, %s112
          %s114 = smul.u32 16, %s11
        $region24: #{tpu_custom_call.1} parent=19 // pred_fallthru
          _
      $region20: #{tpu_custom_call.1} parent=5 // pred_fallthru
        _
      %p115 = scmp.le.s32.totalorder 1, %s11
      %p116 = scmp.lt.s32.totalorder %s11, 3
      %p117 = pnand %p115, %p116
      %p118 = pneg %p117
      // Predicated region
      $region25: #{tpu_custom_call.1} parent=5 // pred_check
        _
      $region26: #{tpu_custom_call.1} parent=5 // pred_check_branch
        %120 = sbr.rel (%p117) target = $region28
      $region27: #{tpu_custom_call.1} parent=5 // pred_region
        %s121 = ssub.s32 %s11, 1
        %s122 = smul.u32 16, %s16
        %p123 = scmp.lt.s32.totalorder %s122, 31
        %s124 = scalar_select %p123, %s122, 31
        %s125 = smul.addr %s124, 4
        %s126 = scalar_lea.vmem %s0, %s125
        %p127 = pneg %p37
        %p128 = pneg %p34
        %p129 = pneg %p58
        %p130 = pneg %p55
        %p131 = pneg %p84
        %p132 = pneg %p81
        %s133 = sand.u32 %s71, 1
        %s134 = scalar_lea.sflag [#allocation3], %s133
        %s135 = sand.u32 %s71, 1
        %s136 = smul.addr %s135, 128
        %s137 = scalar_lea.vmem [#allocation2], %s136
        %s138 = smul.u32 16, %s16
        %p139 = scmp.lt.s32.totalorder %s138, 31
        %s140 = scalar_select %p139, %s138, 31
        %s141 = smul.addr %s140, 4
        %s142 = scalar_lea.vmem %s0, %s141
        %s143 = smul.u32 16, %s16
        %s144 = smul.u32 16, %s16
        %v146 = vld [vmem:[%s142] sm:$0xf]
        %v147 = vld [vmem:[%s142 + $0x4] sm:$0xf]
        %v148 = vld [vmem:[%s142 + $0x8] sm:$0xf]
        %v149 = vld [vmem:[%s142 + $0xc] sm:$0xf]
        %v150 = vld [vmem:[%s142 + $0x10] sm:$0xf]
        %v151 = vld [vmem:[%s142 + $0x14] sm:$0xf]
        %v152 = vld [vmem:[%s142 + $0x18] sm:$0xf]
        %v153 = vld [vmem:[%s142 + $0x1c] sm:$0xf]
        %v154 = vld [vmem:[%s142 + $0x20] sm:$0xf]
        %v155 = vld [vmem:[%s142 + $0x24] sm:$0xf]
        %v156 = vld [vmem:[%s142 + $0x28] sm:$0xf]
        %v157 = vld [vmem:[%s142 + $0x2c] sm:$0xf]
        %v158 = vld [vmem:[%s142 + $0x30] sm:$0xf]
        %v159 = vld [vmem:[%s142 + $0x34] sm:$0xf]
        %v160 = vld [vmem:[%s142 + $0x38] sm:$0xf]
        %v161 = vld [vmem:[%s142 + $0x3c] sm:$0xf]
        %v162 = vld [vmem:[%s1] sm:$0xf]
        %v163 = vld [vmem:[%s1 + $0x4] sm:$0xf]
        %v164 = vld [vmem:[%s1 + $0x8] sm:$0xf]
        %v165 = vld [vmem:[%s1 + $0xc] sm:$0xf]
        %v166 = vld [vmem:[%s1 + $0x10] sm:$0xf]
        %v167 = vld [vmem:[%s1 + $0x14] sm:$0xf]
        %v168 = vld [vmem:[%s1 + $0x18] sm:$0xf]
        %v169 = vld [vmem:[%s1 + $0x1c] sm:$0xf]
        %v170 = vld [vmem:[%s1 + $0x20] sm:$0xf]
        %v171 = vld [vmem:[%s1 + $0x24] sm:$0xf]
        %v172 = vld [vmem:[%s1 + $0x28] sm:$0xf]
        %v173 = vld [vmem:[%s1 + $0x2c] sm:$0xf]
        %v174 = vld [vmem:[%s1 + $0x30] sm:$0xf]
        %v175 = vld [vmem:[%s1 + $0x34] sm:$0xf]
        %v176 = vld [vmem:[%s1 + $0x38] sm:$0xf]
        %v177 = vld [vmem:[%s1 + $0x3c] sm:$0xf]
        %v178 = vld [vmem:[%s1 + $0x40] sm:$0x1]
        %v179 = vunpack.c.l.bf16 %v178
        %v180 = vlaneseq
        %v181 = vshrl.u32 %v180, 7
        %v182 = vsub.s32 0, %v181
        %v183 = vrot.slane %v179, %v182
        %v200 = vunpack.c.l.b16 %v146
        %v201 = vunpack.c.l.b16 %v147
        %v202 = vunpack.c.l.b16 %v148
        %v203 = vunpack.c.l.b16 %v149
        %v204 = vunpack.c.l.b16 %v150
        %v205 = vunpack.c.l.b16 %v151
        %v206 = vunpack.c.l.b16 %v152
        %v207 = vunpack.c.l.b16 %v153
        %v208 = vunpack.c.l.b16 %v154
        %v209 = vunpack.c.l.b16 %v155
        %v210 = vunpack.c.l.b16 %v156
        %v211 = vunpack.c.l.b16 %v157
        %v212 = vunpack.c.l.b16 %v158
        %v213 = vunpack.c.l.b16 %v159
        %v214 = vunpack.c.l.b16 %v160
        %v215 = vunpack.c.l.b16 %v161
        %v216 = vpack.c.b16 %v201, %v200
        %v217 = vpack.c.b16 %v203, %v202
        %v218 = vpack.c.b16 %v205, %v204
        %v219 = vpack.c.b16 %v207, %v206
        %v220 = vpack.c.b16 %v209, %v208
        %v221 = vpack.c.b16 %v211, %v210
        %v222 = vpack.c.b16 %v213, %v212
        %v223 = vpack.c.b16 %v215, %v214
        %v229 = vunpack.c.l.b16 %v162
        %v230 = vunpack.c.l.b16 %v163
        %v231 = vunpack.c.l.b16 %v164
        %v232 = vunpack.c.l.b16 %v165
        %v233 = vunpack.c.l.b16 %v166
        %v234 = vpack.c.b16 %v230, %v229
        %v235 = vpack.c.b16 %v232, %v231
        %v236 = vpack.c.b16 %v233, %v233
        %vm239 = vcmask 326656
        %v241 = vsel %vm239, %v216, 0
        %v244 = vsel %vm239, %v217, 0
        %v247 = vsel %vm239, %v218, 0
        %v250 = vsel %vm239, %v219, 0
        %v253 = vsel %vm239, %v220, 0
        %v256 = vsel %vm239, %v221, 0
        %v259 = vsel %vm239, %v222, 0
        %v262 = vsel %vm239, %v223, 0
        %vm264 = vcmask 1043456
        %v266 = vsel %vm264, %v236, 0
        %268 = vmatprep.subr.bf16.mxu0 0
        %269 = vmatpush1.bf16.msra.mxu0 %v234
        %270 = vmatprep.subr.bf16.mxu0 0
        %271 = vmatpush1.bf16.msra.mxu0 %v235
        %272 = vmatprep.subr.bf16.mxu0 0
        %273 = vmatpush1.bf16.msra.mxu0 %v266
        %274 = vmatprep.subr.bf16.mxu0 0
        %275 = vmatpush1.bf16.msra.mxu0 0
        %276 = vmatprep.subr.bf16.mxu0 0
        %277 = vmatpush1.bf16.msra.mxu0 0
        %278 = vmatprep.subr.bf16.mxu0 0
        %279 = vmatpush1.bf16.msra.mxu0 0
        %280 = vmatprep.subr.bf16.mxu0 0
        %281 = vmatpush1.bf16.msra.mxu0 0
        %282 = vmatprep.subr.bf16.mxu0 0
        %283 = vmatpush1.bf16.msra.mxu0 0
        %284 = vmatprep.subr.bf16.mxu0 0
        %285 = vmatpush1.bf16.msra.mxu0 0
        %286 = vmatprep.subr.bf16.mxu0 0
        %287 = vmatpush1.bf16.msra.mxu0 0
        %288 = vmatprep.subr.bf16.mxu0 0
        %289 = vmatpush1.bf16.msra.mxu0 0
        %290 = vmatprep.subr.bf16.mxu0 0
        %291 = vmatpush1.bf16.msra.mxu0 0
        %292 = vmatprep.subr.bf16.mxu0 0
        %293 = vmatpush1.bf16.msra.mxu0 0
        %294 = vmatprep.subr.bf16.mxu0 0
        %295 = vmatpush1.bf16.msra.mxu0 0
        %296 = vmatprep.subr.bf16.mxu0 0
        %297 = vmatpush1.bf16.msra.mxu0 0
        %298 = vmatprep.subr.bf16.mxu0 0
        %299 = vmatpush1.bf16.msra.mxu0 0
        %300 = vmatprep.mubr.bf16.mxu0 0
        %301 = vmatmul.mubr.bf16.gmra.mrb[0].mxu0 %v241
        %v302 = vpop.f32.mrb[0].mxu0
        %v303 = vadd.f32 %v183, %v302
        %v304 = vpop.f32.mrb[0].mxu0
        %v305 = vpop.f32.mrb[0].mxu0
        %v306 = vadd.f32 %v183, %v305
        %v307 = vpop.f32.mrb[0].mxu0
        %308 = vmatprep.mubr.bf16.mxu0 0
        %309 = vmatmul.mubr.bf16.gmra.mrb[0].mxu0 %v244
        %v310 = vpop.f32.mrb[0].mxu0
        %v311 = vadd.f32 %v183, %v310
        %v312 = vpop.f32.mrb[0].mxu0
        %v313 = vpop.f32.mrb[0].mxu0
        %v314 = vadd.f32 %v183, %v313
        %v315 = vpop.f32.mrb[0].mxu0
        %316 = vmatprep.mubr.bf16.mxu0 0
        %317 = vmatmul.mubr.bf16.gmra.mrb[0].mxu0 %v247
        %v318 = vpop.f32.mrb[0].mxu0
        %v319 = vadd.f32 %v183, %v318
        %v320 = vpop.f32.mrb[0].mxu0
        %v321 = vpop.f32.mrb[0].mxu0
        %v322 = vadd.f32 %v183, %v321
        %v323 = vpop.f32.mrb[0].mxu0
        %324 = vmatprep.mubr.bf16.mxu0 0
        %325 = vmatmul.mubr.bf16.gmra.mrb[0].mxu0 %v250
        %v326 = vpop.f32.mrb[0].mxu0
        %v327 = vadd.f32 %v183, %v326
        %v328 = vpop.f32.mrb[0].mxu0
        %v329 = vpop.f32.mrb[0].mxu0
        %v330 = vadd.f32 %v183, %v329
        %v331 = vpop.f32.mrb[0].mxu0
        %332 = vmatprep.mubr.bf16.mxu0 0
        %333 = vmatmul.mubr.bf16.gmra.mrb[0].mxu0 %v253
        %v334 = vpop.f32.mrb[0].mxu0
        %v335 = vadd.f32 %v183, %v334
        %v336 = vpop.f32.mrb[0].mxu0
        %v337 = vpop.f32.mrb[0].mxu0
        %v338 = vadd.f32 %v183, %v337
        %v339 = vpop.f32.mrb[0].mxu0
        %340 = vmatprep.mubr.bf16.mxu0 0
        %341 = vmatmul.mubr.bf16.gmra.mrb[0].mxu0 %v256
        %v342 = vpop.f32.mrb[0].mxu0
        %v343 = vadd.f32 %v183, %v342
        %v344 = vpop.f32.mrb[0].mxu0
        %v345 = vpop.f32.mrb[0].mxu0
        %v346 = vadd.f32 %v183, %v345
        %v347 = vpop.f32.mrb[0].mxu0
        %348 = vmatprep.mubr.bf16.mxu0 0
        %349 = vmatmul.mubr.bf16.gmra.mrb[0].mxu0 %v259
        %v350 = vpop.f32.mrb[0].mxu0
        %v351 = vadd.f32 %v183, %v350
        %v352 = vpop.f32.mrb[0].mxu0
        %v353 = vpop.f32.mrb[0].mxu0
        %v354 = vadd.f32 %v183, %v353
        %v355 = vpop.f32.mrb[0].mxu0
        %356 = vmatprep.mubr.bf16.mxu0 0
        %357 = vmatmul.mubr.bf16.gmra.mrb[0].mxu0 %v262
        %v358 = vpop.f32.mrb[0].mxu0
        %v359 = vadd.f32 %v183, %v358
        %v360 = vpop.f32.mrb[0].mxu0
        %v361 = vpop.f32.mrb[0].mxu0
        %v362 = vadd.f32 %v183, %v361
        %v363 = vpop.f32.mrb[0].mxu0
        %364 = vdwg.mxu0
        %v365 = vsub.f32 0.0, %v303
        %v366 = vsub.f32 0.0, %v306
        %v367 = vsub.f32 0.0, %v311
        %v368 = vsub.f32 0.0, %v314
        %v369 = vsub.f32 0.0, %v319
        %v370 = vsub.f32 0.0, %v322
        %v371 = vsub.f32 0.0, %v327
        %v372 = vsub.f32 0.0, %v330
        %v373 = vsub.f32 0.0, %v335
        %v374 = vsub.f32 0.0, %v338
        %v375 = vsub.f32 0.0, %v343
        %v376 = vsub.f32 0.0, %v346
        %v377 = vsub.f32 0.0, %v351
        %v378 = vsub.f32 0.0, %v354
        %v379 = vsub.f32 0.0, %v359
        %v380 = vsub.f32 0.0, %v362
        %v381 = vmul.f32 %v365, 1.442695
        %v382 = vpow.pop %v381
        %v383 = vmul.f32 %v366, 1.442695
        %v384 = vpow.pop %v383
        %v385 = vmul.f32 %v367, 1.442695
        %v386 = vpow.pop %v385
        %v387 = vmul.f32 %v368, 1.442695
        %v388 = vpow.pop %v387
        %v389 = vmul.f32 %v369, 1.442695
        %v390 = vpow.pop %v389
        %v391 = vmul.f32 %v370, 1.442695
        %v392 = vpow.pop %v391
        %v393 = vmul.f32 %v371, 1.442695
        %v394 = vpow.pop %v393
        %v395 = vmul.f32 %v372, 1.442695
        %v396 = vpow.pop %v395
        %v397 = vmul.f32 %v373, 1.442695
        %v398 = vpow.pop %v397
        %v399 = vmul.f32 %v374, 1.442695
        %v400 = vpow.pop %v399
        %v401 = vmul.f32 %v375, 1.442695
        %v402 = vpow.pop %v401
        %v403 = vmul.f32 %v376, 1.442695
        %v404 = vpow.pop %v403
        %v405 = vmul.f32 %v377, 1.442695
        %v406 = vpow.pop %v405
        %v407 = vmul.f32 %v378, 1.442695
        %v408 = vpow.pop %v407
        %v409 = vmul.f32 %v379, 1.442695
        %v410 = vpow.pop %v409
        %v411 = vmul.f32 %v380, 1.442695
        %v412 = vpow.pop %v411
        %v413 = vadd.f32 %v382, 1.0
        %v414 = vadd.f32 %v384, 1.0
        %v415 = vadd.f32 %v386, 1.0
        %v416 = vadd.f32 %v388, 1.0
        %v417 = vadd.f32 %v390, 1.0
        %v418 = vadd.f32 %v392, 1.0
        %v419 = vadd.f32 %v394, 1.0
        %v420 = vadd.f32 %v396, 1.0
        %v421 = vadd.f32 %v398, 1.0
        %v422 = vadd.f32 %v400, 1.0
        %v423 = vadd.f32 %v402, 1.0
        %v424 = vadd.f32 %v404, 1.0
        %v425 = vadd.f32 %v406, 1.0
        %v426 = vadd.f32 %v408, 1.0
        %v427 = vadd.f32 %v410, 1.0
        %v428 = vadd.f32 %v412, 1.0
        %v429 = vrcp.pop %v413
        %v430 = vrcp.pop %v414
        %v431 = vrcp.pop %v415
        %v432 = vrcp.pop %v416
        %v433 = vrcp.pop %v417
        %v434 = vrcp.pop %v418
        %v435 = vrcp.pop %v419
        %v436 = vrcp.pop %v420
        %v437 = vrcp.pop %v421
        %v438 = vrcp.pop %v422
        %v439 = vrcp.pop %v423
        %v440 = vrcp.pop %v424
        %v441 = vrcp.pop %v425
        %v442 = vrcp.pop %v426
        %v443 = vrcp.pop %v427
        %v444 = vrcp.pop %v428
        %v445 = vpack.c.bf16 %v430, %v429
        %v446 = vpack.c.bf16 %v432, %v431
        %v447 = vpack.c.bf16 %v434, %v433
        %v448 = vpack.c.bf16 %v436, %v435
        %v449 = vpack.c.bf16 %v438, %v437
        %v450 = vpack.c.bf16 %v440, %v439
        %v451 = vpack.c.bf16 %v442, %v441
        %v452 = vpack.c.bf16 %v444, %v443
        %v464 = vunpack.c.l.b16 %v167
        %v465 = vunpack.c.l.b16 %v168
        %v466 = vunpack.c.l.b16 %v169
        %v467 = vunpack.c.l.b16 %v170
        %v468 = vunpack.c.l.b16 %v171
        %v469 = vunpack.c.l.b16 %v172
        %v470 = vunpack.c.l.b16 %v173
        %v471 = vunpack.c.l.b16 %v174
        %v472 = vunpack.c.l.b16 %v175
        %v473 = vunpack.c.l.b16 %v176
        %v474 = vunpack.c.l.b16 %v177
        %v475 = vpack.c.b16 %v464, %v233
        %v476 = vpack.c.b16 %v466, %v465
        %v477 = vpack.c.b16 %v468, %v467
        %v478 = vpack.c.b16 %v470, %v469
        %v479 = vpack.c.b16 %v472, %v471
        %v480 = vpack.c.b16 %v474, %v473
        %487 = vmatprep.subr.bf16.mxu0 0
        %488 = vmatpush1.bf16.msra.mxu0 %v234
        %489 = vmatprep.subr.bf16.mxu0 0
        %490 = vmatpush1.bf16.msra.mxu0 %v235
        %491 = vmatprep.subr.bf16.mxu0 0
        %492 = vmatpush1.bf16.msra.mxu0 %v475
        %493 = vmatprep.subr.bf16.mxu0 0
        %494 = vmatpush1.bf16.msra.mxu0 %v476
        %495 = vmatprep.subr.bf16.mxu0 0
        %496 = vmatpush1.bf16.msra.mxu0 %v477
        %497 = vmatprep.subr.bf16.mxu0 0
        %498 = vmatpush1.bf16.msra.mxu0 %v478
        %499 = vmatprep.subr.bf16.mxu0 0
        %500 = vmatpush1.bf16.msra.mxu0 %v479
        %501 = vmatprep.subr.bf16.mxu0 0
        %502 = vmatpush1.bf16.msra.mxu0 %v480
        %503 = vmatprep.subr.bf16.mxu0 0
        %504 = vmatpush1.bf16.msra.mxu0 0
        %505 = vmatprep.subr.bf16.mxu0 0
        %506 = vmatpush1.bf16.msra.mxu0 0
        %507 = vmatprep.subr.bf16.mxu0 0
        %508 = vmatpush1.bf16.msra.mxu0 0
        %509 = vmatprep.subr.bf16.mxu0 0
        %510 = vmatpush1.bf16.msra.mxu0 0
        %511 = vmatprep.subr.bf16.mxu0 0
        %512 = vmatpush1.bf16.msra.mxu0 0
        %513 = vmatprep.subr.bf16.mxu0 0
        %514 = vmatpush1.bf16.msra.mxu0 0
        %515 = vmatprep.subr.bf16.mxu0 0
        %516 = vmatpush1.bf16.msra.mxu0 0
        %517 = vmatprep.subr.bf16.mxu0 0
        %518 = vmatpush1.bf16.msra.mxu0 0
        %519 = vmatprep.mubr.bf16.mxu0 0
        %520 = vmatmul.mubr.bf16.gmra.mrb[0].mxu0 %v445
        %v521 = vpop.f32.mrb[0].mxu0
        %v522 = vadd.f32 %v183, %v521
        %v523 = vpop.f32.mrb[0].mxu0
        %v524 = vpop.f32.mrb[0].mxu0
        %v525 = vadd.f32 %v183, %v524
        %v526 = vpop.f32.mrb[0].mxu0
        %527 = vmatprep.mubr.bf16.mxu0 0
        %528 = vmatmul.mubr.bf16.gmra.mrb[0].mxu0 %v446
        %v529 = vpop.f32.mrb[0].mxu0
        %v530 = vadd.f32 %v183, %v529
        %v531 = vpop.f32.mrb[0].mxu0
        %v532 = vpop.f32.mrb[0].mxu0
        %v533 = vadd.f32 %v183, %v532
        %v534 = vpop.f32.mrb[0].mxu0
        %535 = vmatprep.mubr.bf16.mxu0 0
        %536 = vmatmul.mubr.bf16.gmra.mrb[0].mxu0 %v447
        %v537 = vpop.f32.mrb[0].mxu0
        %v538 = vadd.f32 %v183, %v537
        %v539 = vpop.f32.mrb[0].mxu0
        %v540 = vpop.f32.mrb[0].mxu0
        %v541 = vadd.f32 %v183, %v540
        %v542 = vpop.f32.mrb[0].mxu0
        %543 = vmatprep.mubr.bf16.mxu0 0
        %544 = vmatmul.mubr.bf16.gmra.mrb[0].mxu0 %v448
        %v545 = vpop.f32.mrb[0].mxu0
        %v546 = vadd.f32 %v183, %v545
        %v547 = vpop.f32.mrb[0].mxu0
        %v548 = vpop.f32.mrb[0].mxu0
        %v549 = vadd.f32 %v183, %v548
        %v550 = vpop.f32.mrb[0].mxu0
        %551 = vmatprep.mubr.bf16.mxu0 0
        %552 = vmatmul.mubr.bf16.gmra.mrb[0].mxu0 %v449
        %v553 = vpop.f32.mrb[0].mxu0
        %v554 = vadd.f32 %v183, %v553
        %v555 = vpop.f32.mrb[0].mxu0
        %v556 = vpop.f32.mrb[0].mxu0
        %v557 = vadd.f32 %v183, %v556
        %v558 = vpop.f32.mrb[0].mxu0
        %559 = vmatprep.mubr.bf16.mxu0 0
        %560 = vmatmul.mubr.bf16.gmra.mrb[0].mxu0 %v450
        %v561 = vpop.f32.mrb[0].mxu0
        %v562 = vadd.f32 %v183, %v561
        %v563 = vpop.f32.mrb[0].mxu0
        %v564 = vpop.f32.mrb[0].mxu0
        %v565 = vadd.f32 %v183, %v564
        %v566 = vpop.f32.mrb[0].mxu0
        %567 = vmatprep.mubr.bf16.mxu0 0
        %568 = vmatmul.mubr.bf16.gmra.mrb[0].mxu0 %v451
        %v569 = vpop.f32.mrb[0].mxu0
        %v570 = vadd.f32 %v183, %v569
        %v571 = vpop.f32.mrb[0].mxu0
        %v572 = vpop.f32.mrb[0].mxu0
        %v573 = vadd.f32 %v183, %v572
        %v574 = vpop.f32.mrb[0].mxu0
        %575 = vmatprep.mubr.bf16.mxu0 0
        %576 = vmatmul.mubr.bf16.gmra.mrb[0].mxu0 %v452
        %v577 = vpop.f32.mrb[0].mxu0
        %v578 = vadd.f32 %v183, %v577
        %v579 = vpop.f32.mrb[0].mxu0
        %v580 = vpop.f32.mrb[0].mxu0
        %v581 = vadd.f32 %v183, %v580
        %v582 = vpop.f32.mrb[0].mxu0
        %583 = vdwg.mxu0
        %v584 = vsub.f32 0.0, %v522
        %v585 = vsub.f32 0.0, %v525
        %v586 = vsub.f32 0.0, %v530
        %v587 = vsub.f32 0.0, %v533
        %v588 = vsub.f32 0.0, %v538
        %v589 = vsub.f32 0.0, %v541
        %v590 = vsub.f32 0.0, %v546
        %v591 = vsub.f32 0.0, %v549
        %v592 = vsub.f32 0.0, %v554
        %v593 = vsub.f32 0.0, %v557
        %v594 = vsub.f32 0.0, %v562
        %v595 = vsub.f32 0.0, %v565
        %v596 = vsub.f32 0.0, %v570
        %v597 = vsub.f32 0.0, %v573
        %v598 = vsub.f32 0.0, %v578
        %v599 = vsub.f32 0.0, %v581
        %v600 = vmul.f32 %v584, 1.442695
        %v601 = vpow.pop %v600
        %v602 = vmul.f32 %v585, 1.442695
        %v603 = vpow.pop %v602
        %v604 = vmul.f32 %v586, 1.442695
        %v605 = vpow.pop %v604
        %v606 = vmul.f32 %v587, 1.442695
        %v607 = vpow.pop %v606
        %v608 = vmul.f32 %v588, 1.442695
        %v609 = vpow.pop %v608
        %v610 = vmul.f32 %v589, 1.442695
        %v611 = vpow.pop %v610
        %v612 = vmul.f32 %v590, 1.442695
        %v613 = vpow.pop %v612
        %v614 = vmul.f32 %v591, 1.442695
        %v615 = vpow.pop %v614
        %v616 = vmul.f32 %v592, 1.442695
        %v617 = vpow.pop %v616
        %v618 = vmul.f32 %v593, 1.442695
        %v619 = vpow.pop %v618
        %v620 = vmul.f32 %v594, 1.442695
        %v621 = vpow.pop %v620
        %v622 = vmul.f32 %v595, 1.442695
        %v623 = vpow.pop %v622
        %v624 = vmul.f32 %v596, 1.442695
        %v625 = vpow.pop %v624
        %v626 = vmul.f32 %v597, 1.442695
        %v627 = vpow.pop %v626
        %v628 = vmul.f32 %v598, 1.442695
        %v629 = vpow.pop %v628
        %v630 = vmul.f32 %v599, 1.442695
        %v631 = vpow.pop %v630
        %v632 = vadd.f32 %v601, 1.0
        %v633 = vadd.f32 %v603, 1.0
        %v634 = vadd.f32 %v605, 1.0
        %v635 = vadd.f32 %v607, 1.0
        %v636 = vadd.f32 %v609, 1.0
        %v637 = vadd.f32 %v611, 1.0
        %v638 = vadd.f32 %v613, 1.0
        %v639 = vadd.f32 %v615, 1.0
        %v640 = vadd.f32 %v617, 1.0
        %v641 = vadd.f32 %v619, 1.0
        %v642 = vadd.f32 %v621, 1.0
        %v643 = vadd.f32 %v623, 1.0
        %v644 = vadd.f32 %v625, 1.0
        %v645 = vadd.f32 %v627, 1.0
        %v646 = vadd.f32 %v629, 1.0
        %v647 = vadd.f32 %v631, 1.0
        %v648 = vrcp.pop %v632
        %v649 = vrcp.pop %v633
        %v650 = vrcp.pop %v634
        %v651 = vrcp.pop %v635
        %v652 = vrcp.pop %v636
        %v653 = vrcp.pop %v637
        %v654 = vrcp.pop %v638
        %v655 = vrcp.pop %v639
        %v656 = vrcp.pop %v640
        %v657 = vrcp.pop %v641
        %v658 = vrcp.pop %v642
        %v659 = vrcp.pop %v643
        %v660 = vrcp.pop %v644
        %v661 = vrcp.pop %v645
        %v662 = vrcp.pop %v646
        %v663 = vrcp.pop %v647
        %v664 = vlaneseq
        %v665 = vand.u32 %v664, 127
        %vm666 = vcmp.le.s32.totalorder %v665, 40
        %v667 = vsel %vm666, %v429, %v648
        %v668 = vsel %vm666, %v430, %v649
        %v669 = vsel %vm666, %v431, %v650
        %v670 = vsel %vm666, %v432, %v651
        %v671 = vsel %vm666, %v433, %v652
        %v672 = vsel %vm666, %v434, %v653
        %v673 = vsel %vm666, %v435, %v654
        %v674 = vsel %vm666, %v436, %v655
        %v675 = vsel %vm666, %v437, %v656
        %v676 = vsel %vm666, %v438, %v657
        %v677 = vsel %vm666, %v439, %v658
        %v678 = vsel %vm666, %v440, %v659
        %v679 = vsel %vm666, %v441, %v660
        %v680 = vsel %vm666, %v442, %v661
        %v681 = vsel %vm666, %v443, %v662
        %v682 = vsel %vm666, %v444, %v663
        %683 = vst [vmem:[%s137] sm:$0xff] %v667
        %684 = vst [vmem:[%s137 + $0x8] sm:$0xff] %v668
        %685 = vst [vmem:[%s137 + $0x10] sm:$0xff] %v669
        %686 = vst [vmem:[%s137 + $0x18] sm:$0xff] %v670
        %687 = vst [vmem:[%s137 + $0x20] sm:$0xff] %v671
        %688 = vst [vmem:[%s137 + $0x28] sm:$0xff] %v672
        %689 = vst [vmem:[%s137 + $0x30] sm:$0xff] %v673
        %690 = vst [vmem:[%s137 + $0x38] sm:$0xff] %v674
        %691 = vst [vmem:[%s137 + $0x40] sm:$0xff] %v675
        %692 = vst [vmem:[%s137 + $0x48] sm:$0xff] %v676
        %693 = vst [vmem:[%s137 + $0x50] sm:$0xff] %v677
        %694 = vst [vmem:[%s137 + $0x58] sm:$0xff] %v678
        %695 = vst [vmem:[%s137 + $0x60] sm:$0xff] %v679
        %696 = vst [vmem:[%s137 + $0x68] sm:$0xff] %v680
        %697 = vst [vmem:[%s137 + $0x70] sm:$0xff] %v681
        %698 = vst [vmem:[%s137 + $0x78] sm:$0xff] %v682
        %s699 = sand.u32 %s71, 1
        %s700 = scalar_lea.sflag [#allocation3], %s699
        %s701 = sand.u32 %s71, 1
        %s702 = smul.addr %s701, 128
        %s703 = scalar_lea.vmem [#allocation2], %s702
        // Predicated region
        $region29: #{tpu_custom_call.1} parent=27 // pred_check
          %p704 = pneg %p81
        $region30: #{tpu_custom_call.1} parent=27 // pred_check_branch
          %706 = sbr.rel (%p704) target = $region32
        $region31: #{tpu_custom_call.1} parent=27 // pred_region
          %s707 = smul.u32 16, %s16
          %s709 = ssub.s32 2048, 2048
          %710 = vsyncadd %s700, %s709
          %s711 = smul.addr %s707, 128
          %s712 = scalar_lea.hbm %s2, %s711
          %s713 = sshll.u32 %s703, 4
          %s714 = int_to_ptr.vmem [resolvable:$true] %s713
          %719 = dma.vmem_to_hbm [thread:$0]  %s714, 2048, %s712, %s700, 128, 128, 8
        $region32: #{tpu_custom_call.1} parent=27 // pred_fallthru
          _
      $region28: #{tpu_custom_call.1} parent=5 // pred_fallthru
        _
      %p720 = scmp.le.s32.totalorder 2, %s11
      // Predicated region
      $region33: #{tpu_custom_call.1} parent=5 // pred_check
        %p721 = pneg %p720
      $region34: #{tpu_custom_call.1} parent=5 // pred_check_branch
        %723 = sbr.rel (%p721) target = $region36
      $region35: #{tpu_custom_call.1} parent=5 // pred_region
        %s724 = ssub.s32 %s11, 2
        // Predicated region
        $region37: #{tpu_custom_call.1} parent=35 // pred_check
          %p725 = pneg %p87
        $region38: #{tpu_custom_call.1} parent=35 // pred_check_branch
          %727 = sbr.rel (%p725) target = $region40
        $region39: #{tpu_custom_call.1} parent=35 // pred_region
          %s728 = sand.u32 %s72, 1
          %s729 = scalar_lea.sflag [#allocation3], %s728
          %s730 = sand.u32 %s72, 1
          %s731 = smul.addr %s730, 128
          %s732 = scalar_lea.vmem [#allocation2], %s731
          %733 = dma.done %s729, 2048
        $region40: #{tpu_custom_call.1} parent=35 // pred_fallthru
          _
      $region36: #{tpu_custom_call.1} parent=5 // pred_fallthru
        _
    $region6: #{tpu_custom_call.1} parent=1 // loop_footer
      %s15 = sadd.s32 1, %s11
    $region7: #{tpu_custom_call.1} parent=1 // loop_footer_branch
      %10 = sbr.rel target = $region3
    $region8: #{tpu_custom_call.1} parent=1 // loop_exit
      _
    %734 = vsyncpa [#allocation3], 1
    %s735 = scalar_lea.sflag [#allocation3], 1
    %736 = vsyncpa %s735, 1

</llo_original>
